<compile_context>
chip_gen: v7x
topology: tpu7x:2x2x1
jax: 0.10.0
libtpu: 0.0.40
codegen_flags: <defaults>
</compile_context>

<pallas_src>
import jax
import jax.numpy as jnp
from jax import lax
from jax.experimental import pallas as pl
from jax.experimental.pallas import tpu as pltpu


def _make_kalman_kernel(n, unroll=8):
    """Build a kernel specialized for sequence length `n` (static)."""

    def kalman_kernel(x_ref, params_ref, out_ref):
        # x_ref:      SMEM (N,)  f32 measurements
        # params_ref: SMEM (6,)  f32 = [x0, p0, A, H, Q, R]
        # out_ref:    SMEM (N,)  f32 filtered estimates

        # Hoist loop-invariant scalars.
        A = params_ref[2]
        H = params_ref[3]
        Q = params_ref[4]
        R = params_ref[5]
        A2 = A * A

        def step(u, carry):
            xk, pk = carry
            # --- Riccati (p/K) chain: data-independent, loop-carried critical path.
            p_pred = A2 * pk + Q
            hp = H * p_pred
            denom = H * hp + R
            K = hp / denom
            g = 1.0 - K * H            # shared between x and p updates
            p_new = g * p_pred
            # --- x chain: hangs off K/g; co-issues with next step's p chain
            #     once the loop is unrolled.
            x_pred = A * xk
            x_new = g * x_pred + K * x_ref[u]
            out_ref[u] = x_new
            return (x_new, p_new)

        carry = (params_ref[0], params_ref[1])

        # Manual unroll: main loop over blocks of `unroll`, then a scalar tail.
        n_blocks = n // unroll
        n_main = n_blocks * unroll

        if n_blocks > 0:
            def body_main(i, c):
                base = i * unroll
                for j in range(unroll):        # unrolled at trace time
                    c = step(base + j, c)
                return c

            carry = lax.fori_loop(0, n_blocks, body_main, carry)

        if n_main < n:
            def body_tail(u, c):
                return step(u, c)

            carry = lax.fori_loop(n_main, n, body_tail, carry)

    return kalman_kernel


def kalman_net_v1(x, x0, p0, A, H, Q, R, *, unroll=8):
    """Pallas-backed forward pass of KalmanNetV1. Returns shape (N, 1) f32."""
    x = jnp.asarray(x, dtype=jnp.float32).reshape(-1)
    n = x.shape[0]
    params = jnp.array([x0, p0, A, H, Q, R], dtype=jnp.float32)
    kernel = _make_kalman_kernel(n, unroll=unroll)
    out = pl.pallas_call(
        kernel,
        out_shape=jax.ShapeDtypeStruct((n,), jnp.float32),
        in_specs=[
            pl.BlockSpec(memory_space=pltpu.MemorySpace.SMEM),
            pl.BlockSpec(memory_space=pltpu.MemorySpace.SMEM),
        ],
        out_specs=pl.BlockSpec(memory_space=pltpu.MemorySpace.SMEM),
    )(x, params)
    return out.reshape(n, -1)


def _reference(x, x0, p0, A, H, Q, R):
    """Pure-JAX reference mirroring the PyTorch loop."""
    xs = jnp.asarray(x, dtype=jnp.float32).reshape(-1)

    def step(carry, z):
        xk, pk = carry
        x_pred = A * xk
        p_pred = A * pk * A + Q
        K = p_pred * H / (H * p_pred * H + R)
        x_new = x_pred + K * (z - H * x_pred)
        p_new = p_pred - K * H * p_pred
        return (x_new, p_new), x_new

    (_, _), est = lax.scan(step, (jnp.float32(x0), jnp.float32(p0)), xs)
    return est.reshape(xs.shape[0], -1)


if __name__ == "__main__":
    # deterministic "module init" scalars (shapes from __init__: all scalars)
    x0, p0 = 0.0, 1.0
    A, H, Q, R = 0.9, 0.5, 0.01, 0.1

    key = jax.random.PRNGKey(0)
    k1, k2 = jax.random.split(key)

    # Small sequence, consistent with forward(): x of shape (len_sample,).
    seq = 8
    x_small = jax.random.normal(k1, (seq,), dtype=jnp.float32)
    out_small = jax.block_until_ready(kalman_net_v1(x_small, x0, p0, A, H, Q, R))
    ref_small = _reference(x_small, x0, p0, A, H, Q, R)
    assert out_small.shape == (seq, 1), out_small.shape
    assert jnp.allclose(out_small, ref_small, rtol=1e-5, atol=1e-6), (out_small, ref_small)

    # Longer sequence that exercises both the unrolled main loop and the tail.
    seq_long = 1003
    x_long = jax.random.normal(k2, (seq_long,), dtype=jnp.float32)
    out_long = jax.block_until_ready(kalman_net_v1(x_long, x0, p0, A, H, Q, R))
    ref_long = _reference(x_long, x0, p0, A, H, Q, R)
    assert out_long.shape == (seq_long, 1), out_long.shape
    assert jnp.allclose(out_long, ref_long, rtol=1e-5, atol=1e-5), "long-sequence mismatch"

    print("KERNEL_OK")
</pallas_src>

<mosaic_0001>
module attributes {stable_mosaic.version = 11 : i64} {
  func.func @kalman_kernel(%arg0: memref<8xf32, #tpu.memory_space<smem>>, %arg1: memref<6xf32, #tpu.memory_space<smem>>, %arg2: memref<8xf32, #tpu.memory_space<smem>>) attributes {dimension_semantics = [], scalar_prefetch = 0 : i64, scratch_operands = 0 : i64, tpu.core_type = #tpu.core_type<tc>} {
    %c2 = arith.constant 2 : index
    %0 = memref.load %arg1[%c2] : memref<6xf32, #tpu.memory_space<smem>>
    %c3 = arith.constant 3 : index
    %1 = memref.load %arg1[%c3] : memref<6xf32, #tpu.memory_space<smem>>
    %c4 = arith.constant 4 : index
    %2 = memref.load %arg1[%c4] : memref<6xf32, #tpu.memory_space<smem>>
    %c5 = arith.constant 5 : index
    %3 = memref.load %arg1[%c5] : memref<6xf32, #tpu.memory_space<smem>>
    %4 = arith.mulf %0, %0 : f32
    %c0 = arith.constant 0 : index
    %5 = memref.load %arg1[%c0] : memref<6xf32, #tpu.memory_space<smem>>
    %c1 = arith.constant 1 : index
    %6 = memref.load %arg1[%c1] : memref<6xf32, #tpu.memory_space<smem>>
    %c0_i32 = arith.constant 0 : i32
    %c8_i32 = arith.constant 8 : i32
    %7 = arith.muli %c0_i32, %c8_i32 : i32
    %c0_i32_0 = arith.constant 0 : i32
    %8 = arith.addi %7, %c0_i32_0 : i32
    %9 = arith.mulf %4, %6 : f32
    %10 = arith.addf %9, %2 : f32
    %11 = arith.mulf %1, %10 : f32
    %12 = arith.mulf %1, %11 : f32
    %13 = arith.addf %12, %3 : f32
    %14 = arith.divf %11, %13 : f32
    %15 = arith.mulf %14, %1 : f32
    %cst = arith.constant 1.000000e+00 : f32
    %16 = arith.subf %cst, %15 : f32
    %17 = arith.mulf %16, %10 : f32
    %18 = arith.mulf %0, %5 : f32
    %19 = arith.mulf %16, %18 : f32
    %20 = arith.index_cast %8 : i32 to index
    %21 = memref.load %arg0[%20] : memref<8xf32, #tpu.memory_space<smem>>
    %22 = arith.mulf %14, %21 : f32
    %23 = arith.addf %19, %22 : f32
    %24 = arith.index_cast %8 : i32 to index
    %25 = memref.load %arg2[%24] : memref<8xf32, #tpu.memory_space<smem>>
    memref.store %23, %arg2[%24] : memref<8xf32, #tpu.memory_space<smem>>
    %c1_i32 = arith.constant 1 : i32
    %26 = arith.addi %7, %c1_i32 : i32
    %27 = arith.mulf %4, %17 : f32
    %28 = arith.addf %27, %2 : f32
    %29 = arith.mulf %1, %28 : f32
    %30 = arith.mulf %1, %29 : f32
    %31 = arith.addf %30, %3 : f32
    %32 = arith.divf %29, %31 : f32
    %33 = arith.mulf %32, %1 : f32
    %cst_1 = arith.constant 1.000000e+00 : f32
    %34 = arith.subf %cst_1, %33 : f32
    %35 = arith.mulf %34, %28 : f32
    %36 = arith.mulf %0, %23 : f32
    %37 = arith.mulf %34, %36 : f32
    %38 = arith.index_cast %26 : i32 to index
    %39 = memref.load %arg0[%38] : memref<8xf32, #tpu.memory_space<smem>>
    %40 = arith.mulf %32, %39 : f32
    %41 = arith.addf %37, %40 : f32
    %42 = arith.index_cast %26 : i32 to index
    %43 = memref.load %arg2[%42] : memref<8xf32, #tpu.memory_space<smem>>
    memref.store %41, %arg2[%42] : memref<8xf32, #tpu.memory_space<smem>>
    %c2_i32 = arith.constant 2 : i32
    %44 = arith.addi %7, %c2_i32 : i32
    %45 = arith.mulf %4, %35 : f32
    %46 = arith.addf %45, %2 : f32
    %47 = arith.mulf %1, %46 : f32
    %48 = arith.mulf %1, %47 : f32
    %49 = arith.addf %48, %3 : f32
    %50 = arith.divf %47, %49 : f32
    %51 = arith.mulf %50, %1 : f32
    %cst_2 = arith.constant 1.000000e+00 : f32
    %52 = arith.subf %cst_2, %51 : f32
    %53 = arith.mulf %52, %46 : f32
    %54 = arith.mulf %0, %41 : f32
    %55 = arith.mulf %52, %54 : f32
    %56 = arith.index_cast %44 : i32 to index
    %57 = memref.load %arg0[%56] : memref<8xf32, #tpu.memory_space<smem>>
    %58 = arith.mulf %50, %57 : f32
    %59 = arith.addf %55, %58 : f32
    %60 = arith.index_cast %44 : i32 to index
    %61 = memref.load %arg2[%60] : memref<8xf32, #tpu.memory_space<smem>>
    memref.store %59, %arg2[%60] : memref<8xf32, #tpu.memory_space<smem>>
    %c3_i32 = arith.constant 3 : i32
    %62 = arith.addi %7, %c3_i32 : i32
    %63 = arith.mulf %4, %53 : f32
    %64 = arith.addf %63, %2 : f32
    %65 = arith.mulf %1, %64 : f32
    %66 = arith.mulf %1, %65 : f32
    %67 = arith.addf %66, %3 : f32
    %68 = arith.divf %65, %67 : f32
    %69 = arith.mulf %68, %1 : f32
    %cst_3 = arith.constant 1.000000e+00 : f32
    %70 = arith.subf %cst_3, %69 : f32
    %71 = arith.mulf %70, %64 : f32
    %72 = arith.mulf %0, %59 : f32
    %73 = arith.mulf %70, %72 : f32
    %74 = arith.index_cast %62 : i32 to index
    %75 = memref.load %arg0[%74] : memref<8xf32, #tpu.memory_space<smem>>
    %76 = arith.mulf %68, %75 : f32
    %77 = arith.addf %73, %76 : f32
    %78 = arith.index_cast %62 : i32 to index
    %79 = memref.load %arg2[%78] : memref<8xf32, #tpu.memory_space<smem>>
    memref.store %77, %arg2[%78] : memref<8xf32, #tpu.memory_space<smem>>
    %c4_i32 = arith.constant 4 : i32
    %80 = arith.addi %7, %c4_i32 : i32
    %81 = arith.mulf %4, %71 : f32
    %82 = arith.addf %81, %2 : f32
    %83 = arith.mulf %1, %82 : f32
    %84 = arith.mulf %1, %83 : f32
    %85 = arith.addf %84, %3 : f32
    %86 = arith.divf %83, %85 : f32
    %87 = arith.mulf %86, %1 : f32
    %cst_4 = arith.constant 1.000000e+00 : f32
    %88 = arith.subf %cst_4, %87 : f32
    %89 = arith.mulf %88, %82 : f32
    %90 = arith.mulf %0, %77 : f32
    %91 = arith.mulf %88, %90 : f32
    %92 = arith.index_cast %80 : i32 to index
    %93 = memref.load %arg0[%92] : memref<8xf32, #tpu.memory_space<smem>>
    %94 = arith.mulf %86, %93 : f32
    %95 = arith.addf %91, %94 : f32
    %96 = arith.index_cast %80 : i32 to index
    %97 = memref.load %arg2[%96] : memref<8xf32, #tpu.memory_space<smem>>
    memref.store %95, %arg2[%96] : memref<8xf32, #tpu.memory_space<smem>>
    %c5_i32 = arith.constant 5 : i32
    %98 = arith.addi %7, %c5_i32 : i32
    %99 = arith.mulf %4, %89 : f32
    %100 = arith.addf %99, %2 : f32
    %101 = arith.mulf %1, %100 : f32
    %102 = arith.mulf %1, %101 : f32
    %103 = arith.addf %102, %3 : f32
    %104 = arith.divf %101, %103 : f32
    %105 = arith.mulf %104, %1 : f32
    %cst_5 = arith.constant 1.000000e+00 : f32
    %106 = arith.subf %cst_5, %105 : f32
    %107 = arith.mulf %106, %100 : f32
    %108 = arith.mulf %0, %95 : f32
    %109 = arith.mulf %106, %108 : f32
    %110 = arith.index_cast %98 : i32 to index
    %111 = memref.load %arg0[%110] : memref<8xf32, #tpu.memory_space<smem>>
    %112 = arith.mulf %104, %111 : f32
    %113 = arith.addf %109, %112 : f32
    %114 = arith.index_cast %98 : i32 to index
    %115 = memref.load %arg2[%114] : memref<8xf32, #tpu.memory_space<smem>>
    memref.store %113, %arg2[%114] : memref<8xf32, #tpu.memory_space<smem>>
    %c6_i32 = arith.constant 6 : i32
    %116 = arith.addi %7, %c6_i32 : i32
    %117 = arith.mulf %4, %107 : f32
    %118 = arith.addf %117, %2 : f32
    %119 = arith.mulf %1, %118 : f32
    %120 = arith.mulf %1, %119 : f32
    %121 = arith.addf %120, %3 : f32
    %122 = arith.divf %119, %121 : f32
    %123 = arith.mulf %122, %1 : f32
    %cst_6 = arith.constant 1.000000e+00 : f32
    %124 = arith.subf %cst_6, %123 : f32
    %125 = arith.mulf %124, %118 : f32
    %126 = arith.mulf %0, %113 : f32
    %127 = arith.mulf %124, %126 : f32
    %128 = arith.index_cast %116 : i32 to index
    %129 = memref.load %arg0[%128] : memref<8xf32, #tpu.memory_space<smem>>
    %130 = arith.mulf %122, %129 : f32
    %131 = arith.addf %127, %130 : f32
    %132 = arith.index_cast %116 : i32 to index
    %133 = memref.load %arg2[%132] : memref<8xf32, #tpu.memory_space<smem>>
    memref.store %131, %arg2[%132] : memref<8xf32, #tpu.memory_space<smem>>
    %c7_i32 = arith.constant 7 : i32
    %134 = arith.addi %7, %c7_i32 : i32
    %135 = arith.mulf %4, %125 : f32
    %136 = arith.addf %135, %2 : f32
    %137 = arith.mulf %1, %136 : f32
    %138 = arith.mulf %1, %137 : f32
    %139 = arith.addf %138, %3 : f32
    %140 = arith.divf %137, %139 : f32
    %141 = arith.mulf %140, %1 : f32
    %cst_7 = arith.constant 1.000000e+00 : f32
    %142 = arith.subf %cst_7, %141 : f32
    %143 = arith.mulf %142, %136 : f32
    %144 = arith.mulf %0, %131 : f32
    %145 = arith.mulf %142, %144 : f32
    %146 = arith.index_cast %134 : i32 to index
    %147 = memref.load %arg0[%146] : memref<8xf32, #tpu.memory_space<smem>>
    %148 = arith.mulf %140, %147 : f32
    %149 = arith.addf %145, %148 : f32
    %150 = arith.index_cast %134 : i32 to index
    %151 = memref.load %arg2[%150] : memref<8xf32, #tpu.memory_space<smem>>
    memref.store %149, %arg2[%150] : memref<8xf32, #tpu.memory_space<smem>>
    %c1_i32_8 = arith.constant 1 : i32
    return
  }
}

</mosaic_0001>

<llo_original>
// kernel: tpu_custom_call.1
$region0: #{tpu_custom_call.1}
  #allocation0 [shape = 'u32[]', space=smem, size = 0x4, offset = 0x4, fixed_abs, tag = 'smem constant byte address 0x4 - core index']
  #allocation1 [shape = 'u32[144,128]{1,0:T(1,128)}', space=vmem, size = 0x12000, scoped, tag = 'internal scratch']
  %s0 = inlined_call_operand.hbm [shape: f32[8], index: 0, kind: input, shape index: {}]
  %s1 = inlined_call_operand.vmem [shape: f32[6], index: 1, kind: input, shape index: {}]
  %s2 = inlined_call_operand.hbm [shape: f32[8], index: 2, kind: output, shape index: {}]
  %s3 = sld [smem:[#allocation0]]
  $region26: #{tpu_custom_call.1} parent=0
    _
  %s5 = ssub.s32 1, %s3
  %s6 = scalar_select 0, %s5, %s3
  $region1: #{tpu_custom_call.1} parent=0
    #allocation2 [shape = 'u8[512]{0}', space=smem, size = 0x200, scoped, tag = 'input window, operand 0, single buffered']
    #allocation3 [shape = 's32[1]{0}', space=sflag, size = 0x4, scoped, tag = 'scoped memory for tpu_custom_call.1']
    #allocation4 [shape = 's32[1]{0}', space=sflag, size = 0x4, scoped, tag = 'scoped memory for tpu_custom_call.1']
    #allocation5 [shape = 's32[1]{0}', space=sflag, size = 0x4, scoped, tag = 'scoped memory for tpu_custom_call.1']
    #allocation6 [shape = 'u8[512]{0}', space=smem, size = 0x200, scoped, tag = 'input window, operand 1, single buffered']
    #allocation7 [shape = 'u8[512]{0}', space=smem, size = 0x200, scoped, tag = 'output window, operand 0, single buffered']
    %7 = vsyncpa [#allocation3], 0
    %8 = vsyncpa [#allocation5], 0
    %9 = vsyncpa [#allocation4], 0
    // Predicated region
    $region2: #{tpu_custom_call.1} parent=1 // pred_check
      _
    $region3: #{tpu_custom_call.1} parent=1 // pred_check_branch
      %11 = sbr.rel (0) target = $region5
    $region4: #{tpu_custom_call.1} parent=1 // pred_region
      %s13 = ssub.s32 16, 16
      %14 = vsyncadd [#allocation3], %s13
      %17 = dma.hbm_to_smem %s0, 16, [#allocation2], [#allocation3]
    $region5: #{tpu_custom_call.1} parent=1 // pred_fallthru
      _
    // Predicated region
    $region6: #{tpu_custom_call.1} parent=1 // pred_check
      _
    $region7: #{tpu_custom_call.1} parent=1 // pred_check_branch
      %19 = sbr.rel (0) target = $region9
    $region8: #{tpu_custom_call.1} parent=1 // pred_region
      %s21 = ssub.s32 16, 16
      %22 = vsyncadd [#allocation5], %s21
      %s24 = sshll.u32 %s1, 4
      %s25 = int_to_ptr.vmem [resolvable:$true] %s24
      %27 = dma.vmem_to_smem %s25, 16, [#allocation6], [#allocation5]
    $region9: #{tpu_custom_call.1} parent=1 // pred_fallthru
      _
    // Predicated region
    $region10: #{tpu_custom_call.1} parent=1 // pred_check
      _
    $region11: #{tpu_custom_call.1} parent=1 // pred_check_branch
      %29 = sbr.rel (0) target = $region13
    $region12: #{tpu_custom_call.1} parent=1 // pred_region
      %30 = dma.done [#allocation3], 16
    $region13: #{tpu_custom_call.1} parent=1 // pred_fallthru
      _
    // Predicated region
    $region14: #{tpu_custom_call.1} parent=1 // pred_check
      _
    $region15: #{tpu_custom_call.1} parent=1 // pred_check_branch
      %32 = sbr.rel (0) target = $region17
    $region16: #{tpu_custom_call.1} parent=1 // pred_region
      %33 = dma.done [#allocation5], 16
    $region17: #{tpu_custom_call.1} parent=1 // pred_fallthru
      _
    %34 = sfence
    %s35 = sld [smem:[#allocation6 + $0x2]]
    %s36 = sld [smem:[#allocation6 + $0x3]]
    %s37 = sld [smem:[#allocation6 + $0x4]]
    %s38 = sld [smem:[#allocation6 + $0x5]]
    %s39 = smul.f32 %s35, %s35
    %s40 = sld [smem:[#allocation6]]
    %s41 = sld [smem:[#allocation6 + $0x1]]
    %s42 = smul.f32 %s39, %s41
    %s43 = sadd.f32 %s42, %s37
    %s44 = smul.f32 %s36, %s43
    %s45 = smul.f32 %s36, %s44
    %s46 = sadd.f32 %s45, %s38
    %v47 = vstv %s46
    %v48 = vrcp.pop %v47
    %s49 = vtos %v48
    %s50 = smul.f32 %s44, %s49
    %s51 = smul.f32 %s50, %s36
    %s52 = ssub.f32 1.0, %s51
    %s53 = smul.f32 %s52, %s43
    %s54 = smul.f32 %s35, %s40
    %s55 = smul.f32 %s52, %s54
    %s56 = sld [smem:[#allocation2]]
    %s57 = smul.f32 %s50, %s56
    %s58 = sadd.f32 %s55, %s57
    %s59 = scalar_lea.smem [#allocation7], 0
    %60 = sst [smem:[%s59]] %s58
    %s61 = smul.f32 %s39, %s53
    %s62 = sadd.f32 %s61, %s37
    %s63 = smul.f32 %s36, %s62
    %s64 = smul.f32 %s36, %s63
    %s65 = sadd.f32 %s64, %s38
    %v66 = vstv %s65
    %v67 = vrcp.pop %v66
    %s68 = vtos %v67
    %s69 = smul.f32 %s63, %s68
    %s70 = smul.f32 %s69, %s36
    %s71 = ssub.f32 1.0, %s70
    %s72 = smul.f32 %s71, %s62
    %s73 = smul.f32 %s35, %s58
    %s74 = smul.f32 %s71, %s73
    %s75 = sld [smem:[#allocation2 + $0x1]]
    %s76 = smul.f32 %s69, %s75
    %s77 = sadd.f32 %s74, %s76
    %s78 = scalar_lea.smem [#allocation7], 1
    %79 = sst [smem:[%s78]] %s77
    %s80 = smul.f32 %s39, %s72
    %s81 = sadd.f32 %s80, %s37
    %s82 = smul.f32 %s36, %s81
    %s83 = smul.f32 %s36, %s82
    %s84 = sadd.f32 %s83, %s38
    %v85 = vstv %s84
    %v86 = vrcp.pop %v85
    %s87 = vtos %v86
    %s88 = smul.f32 %s82, %s87
    %s89 = smul.f32 %s88, %s36
    %s90 = ssub.f32 1.0, %s89
    %s91 = smul.f32 %s90, %s81
    %s92 = smul.f32 %s35, %s77
    %s93 = smul.f32 %s90, %s92
    %s94 = sld [smem:[#allocation2 + $0x2]]
    %s95 = smul.f32 %s88, %s94
    %s96 = sadd.f32 %s93, %s95
    %s97 = scalar_lea.smem [#allocation7], 2
    %98 = sst [smem:[%s97]] %s96
    %s99 = smul.f32 %s39, %s91
    %s100 = sadd.f32 %s99, %s37
    %s101 = smul.f32 %s36, %s100
    %s102 = smul.f32 %s36, %s101
    %s103 = sadd.f32 %s102, %s38
    %v104 = vstv %s103
    %v105 = vrcp.pop %v104
    %s106 = vtos %v105
    %s107 = smul.f32 %s101, %s106
    %s108 = smul.f32 %s107, %s36
    %s109 = ssub.f32 1.0, %s108
    %s110 = smul.f32 %s109, %s100
    %s111 = smul.f32 %s35, %s96
    %s112 = smul.f32 %s109, %s111
    %s113 = sld [smem:[#allocation2 + $0x3]]
    %s114 = smul.f32 %s107, %s113
    %s115 = sadd.f32 %s112, %s114
    %s116 = scalar_lea.smem [#allocation7], 3
    %117 = sst [smem:[%s116]] %s115
    %s118 = smul.f32 %s39, %s110
    %s119 = sadd.f32 %s118, %s37
    %s120 = smul.f32 %s36, %s119
    %s121 = smul.f32 %s36, %s120
    %s122 = sadd.f32 %s121, %s38
    %v123 = vstv %s122
    %v124 = vrcp.pop %v123
    %s125 = vtos %v124
    %s126 = smul.f32 %s120, %s125
    %s127 = smul.f32 %s126, %s36
    %s128 = ssub.f32 1.0, %s127
    %s129 = smul.f32 %s128, %s119
    %s130 = smul.f32 %s35, %s115
    %s131 = smul.f32 %s128, %s130
    %s132 = sld [smem:[#allocation2 + $0x4]]
    %s133 = smul.f32 %s126, %s132
    %s134 = sadd.f32 %s131, %s133
    %s135 = scalar_lea.smem [#allocation7], 4
    %136 = sst [smem:[%s135]] %s134
    %s137 = smul.f32 %s39, %s129
    %s138 = sadd.f32 %s137, %s37
    %s139 = smul.f32 %s36, %s138
    %s140 = smul.f32 %s36, %s139
    %s141 = sadd.f32 %s140, %s38
    %v142 = vstv %s141
    %v143 = vrcp.pop %v142
    %s144 = vtos %v143
    %s145 = smul.f32 %s139, %s144
    %s146 = smul.f32 %s145, %s36
    %s147 = ssub.f32 1.0, %s146
    %s148 = smul.f32 %s147, %s138
    %s149 = smul.f32 %s35, %s134
    %s150 = smul.f32 %s147, %s149
    %s151 = sld [smem:[#allocation2 + $0x5]]
    %s152 = smul.f32 %s145, %s151
    %s153 = sadd.f32 %s150, %s152
    %s154 = scalar_lea.smem [#allocation7], 5
    %155 = sst [smem:[%s154]] %s153
    %s156 = smul.f32 %s39, %s148
    %s157 = sadd.f32 %s156, %s37
    %s158 = smul.f32 %s36, %s157
    %s159 = smul.f32 %s36, %s158
    %s160 = sadd.f32 %s159, %s38
    %v161 = vstv %s160
    %v162 = vrcp.pop %v161
    %s163 = vtos %v162
    %s164 = smul.f32 %s158, %s163
    %s165 = smul.f32 %s164, %s36
    %s166 = ssub.f32 1.0, %s165
    %s167 = smul.f32 %s166, %s157
    %s168 = smul.f32 %s35, %s153
    %s169 = smul.f32 %s166, %s168
    %s170 = sld [smem:[#allocation2 + $0x6]]
    %s171 = smul.f32 %s164, %s170
    %s172 = sadd.f32 %s169, %s171
    %s173 = scalar_lea.smem [#allocation7], 6
    %174 = sst [smem:[%s173]] %s172
    %s175 = smul.f32 %s39, %s167
    %s176 = sadd.f32 %s175, %s37
    %s177 = smul.f32 %s36, %s176
    %s178 = smul.f32 %s36, %s177
    %s179 = sadd.f32 %s178, %s38
    %v180 = vstv %s179
    %v181 = vrcp.pop %v180
    %s182 = vtos %v181
    %s183 = smul.f32 %s177, %s182
    %s184 = smul.f32 %s183, %s36
    %s185 = ssub.f32 1.0, %s184
    %s186 = smul.f32 %s35, %s172
    %s187 = smul.f32 %s185, %s186
    %s188 = sld [smem:[#allocation2 + $0x7]]
    %s189 = smul.f32 %s183, %s188
    %s190 = sadd.f32 %s187, %s189
    %s191 = scalar_lea.smem [#allocation7], 7
    %192 = sst [smem:[%s191]] %s190
    // Predicated region
    $region18: #{tpu_custom_call.1} parent=1 // pred_check
      _
    $region19: #{tpu_custom_call.1} parent=1 // pred_check_branch
      %194 = sbr.rel (0) target = $region21
    $region20: #{tpu_custom_call.1} parent=1 // pred_region
      %s196 = ssub.s32 16, 16
      %197 = vsyncadd [#allocation4], %s196
      %200 = dma.smem_to_hbm [#allocation7], 16, %s2, [#allocation4]
    $region21: #{tpu_custom_call.1} parent=1 // pred_fallthru
      _
    // Predicated region
    $region22: #{tpu_custom_call.1} parent=1 // pred_check
      _
    $region23: #{tpu_custom_call.1} parent=1 // pred_check_branch
      %202 = sbr.rel (0) target = $region25
    $region24: #{tpu_custom_call.1} parent=1 // pred_region
      %203 = dma.done [#allocation4], 16
    $region25: #{tpu_custom_call.1} parent=1 // pred_fallthru
      _
    %204 = sfence
    %205 = vsyncpa [#allocation3], 1
    %206 = vsyncpa [#allocation4], 1
    %207 = vsyncpa [#allocation5], 1

</llo_original>
